<compile_context>
chip_gen: v5e
topology: v5e:2x2
jax: 0.10.0
libtpu: 0.0.40
codegen_flags: <defaults>
</compile_context>

<pallas_src>
import jax
import jax.numpy as jnp
from jax.experimental import pallas as pl
from jax.experimental.pallas import tpu as pltpu

HP = 128  # padded hidden width (real hidden = 8)


def mlp_kernel(x_ref, w1_ref, b1_ref, w2_ref, b2_ref, w3t_ref, b3_ref, o_ref):
    x = x_ref[...]                                                   # [tb, D] bf16
    h1 = jnp.dot(x, w1_ref[...], preferred_element_type=jnp.float32) + b1_ref[...]
    h1 = jnp.maximum(h1, 0.0)                                        # [tb, HP] f32
    h2 = jnp.dot(h1.astype(jnp.bfloat16), w2_ref[...],
                 preferred_element_type=jnp.float32) + b2_ref[...]
    h2 = jnp.maximum(h2, 0.0)                                        # [tb, HP] f32
    # Final layer in transposed form -> lane-dense [1, tb] output block.
    y_t = jnp.dot(w3t_ref[...], h2.astype(jnp.bfloat16).T,
                  preferred_element_type=jnp.float32) + b3_ref[...]  # [1, tb] f32
    o_ref[...] = jax.lax.erf(y_t)


def _pick_tb(batch):
    # Largest tile (<= 2048) dividing the batch that still leaves >= 2 grid steps
    # (so dimension_semantics=("parallel",) can shard across v7x's 2 TensorCores).
    for cand in (2048, 1024, 512, 256, 128, 64, 32, 16, 8):
        if batch % cand == 0 and batch // cand >= 2:
            return cand
    return batch


def net_8n_forward(x, params):
    """x: [B, D] float32. params: w1 [D,H], b1 [1,H], w2 [H,H], b2 [1,H], w3 [H,1], b3 [1,1]."""
    B, D = x.shape
    H = params["w1"].shape[1]
    assert H <= HP

    f32 = jnp.float32
    # Zero-pad the hidden dim to 128 lanes. Padded columns/rows are exactly zero,
    # so ReLU of the padded lanes stays zero and the final dot is unaffected.
    w1 = jnp.zeros((D, HP), f32).at[:, :H].set(params["w1"])
    b1 = jnp.zeros((1, HP), f32).at[:, :H].set(params["b1"].reshape(1, H))
    w2 = jnp.zeros((HP, HP), f32).at[:H, :H].set(params["w2"])
    b2 = jnp.zeros((1, HP), f32).at[:, :H].set(params["b2"].reshape(1, H))
    w3t = jnp.zeros((1, HP), f32).at[:, :H].set(params["w3"].reshape(H, 1).T)
    b3 = params["b3"].reshape(1, 1).astype(f32)

    # bf16 matmul operands; accumulation stays f32 inside the kernel.
    bf16 = jnp.bfloat16
    xb = x.astype(bf16)
    w1, w2, w3t = w1.astype(bf16), w2.astype(bf16), w3t.astype(bf16)

    tb = _pick_tb(B)
    grid = (B // tb,)

    out = pl.pallas_call(
        mlp_kernel,
        out_shape=jax.ShapeDtypeStruct((1, B), jnp.float32),
        grid_spec=pltpu.PrefetchScalarGridSpec(
            num_scalar_prefetch=0,
            grid=grid,
            in_specs=[
                pl.BlockSpec((tb, D), lambda i: (i, 0)),    # x tile (streamed)
                pl.BlockSpec((D, HP), lambda i: (0, 0)),    # w1 (VMEM resident)
                pl.BlockSpec((1, HP), lambda i: (0, 0)),    # b1
                pl.BlockSpec((HP, HP), lambda i: (0, 0)),   # w2
                pl.BlockSpec((1, HP), lambda i: (0, 0)),    # b2
                pl.BlockSpec((1, HP), lambda i: (0, 0)),    # w3^T
                pl.BlockSpec((1, 1), lambda i: (0, 0)),     # b3
            ],
            out_specs=pl.BlockSpec((1, tb), lambda i: (0, i)),  # lane-dense row
        ),
        compiler_params=pltpu.CompilerParams(
            dimension_semantics=("parallel",),
        ),
    )(xb, w1, b1, w2, b2, w3t, b3)

    return out.reshape(B, 1)


def init_params(key, in_features, hidden=8, out_features=1):
    ks = jax.random.split(key, 6)
    s1 = 1.0 / jnp.sqrt(in_features)
    s2 = 1.0 / jnp.sqrt(hidden)
    return {
        "w1": jax.random.uniform(ks[0], (in_features, hidden), jnp.float32, -s1, s1),
        "b1": jax.random.uniform(ks[1], (1, hidden), jnp.float32, -s1, s1),
        "w2": jax.random.uniform(ks[2], (hidden, hidden), jnp.float32, -s2, s2),
        "b2": jax.random.uniform(ks[3], (1, hidden), jnp.float32, -s2, s2),
        "w3": jax.random.uniform(ks[4], (hidden, out_features), jnp.float32, -s2, s2),
        "b3": jax.random.uniform(ks[5], (1, out_features), jnp.float32, -s2, s2),
    }


if __name__ == "__main__":
    key = jax.random.PRNGKey(0)
    kx, kp = jax.random.split(key)

    B, D = 512, 32                    # batch, flattened feature dim (dataset.data.shape[1])
    x = jax.random.normal(kx, (B, D), jnp.float32)   # Flatten is identity for 2-D input
    params = init_params(kp, D)

    fwd = jax.jit(net_8n_forward)
    out = jax.block_until_ready(fwd(x, params))
    assert out.shape == (B, 1)

    # Reference 1: same bf16 operand rounding as the kernel, f32 accumulation.
    def q(a):
        return a.astype(jnp.bfloat16).astype(jnp.float32)

    h1 = jnp.maximum(q(x) @ q(params["w1"]) + params["b1"], 0.0)
    h2 = jnp.maximum(q(h1) @ q(params["w2"]) + params["b2"], 0.0)
    ref_q = jax.lax.erf(q(h2) @ q(params["w3"]) + params["b3"])
    assert jnp.allclose(out, ref_q, atol=2e-2, rtol=0.0), float(jnp.max(jnp.abs(out - ref_q)))

    # Reference 2: pure f32 (PyTorch semantics); looser tolerance for bf16 operands.
    h1f = jnp.maximum(x @ params["w1"] + params["b1"], 0.0)
    h2f = jnp.maximum(h1f @ params["w2"] + params["b2"], 0.0)
    ref_f = jax.lax.erf(h2f @ params["w3"] + params["b3"])
    assert jnp.allclose(out, ref_f, atol=6e-2, rtol=0.0), float(jnp.max(jnp.abs(out - ref_f)))

    print("KERNEL_OK")
</pallas_src>

<mosaic_0001>
module attributes {stable_mosaic.version = 11 : i64} {
  func.func @mlp_kernel(%arg0: i32, %arg1: memref<256x32xbf16, #tpu.memory_space<vmem>>, %arg2: memref<32x128xbf16, #tpu.memory_space<vmem>>, %arg3: memref<1x128xf32, #tpu.memory_space<vmem>>, %arg4: memref<128x128xbf16, #tpu.memory_space<vmem>>, %arg5: memref<1x128xf32, #tpu.memory_space<vmem>>, %arg6: memref<1x128xbf16, #tpu.memory_space<vmem>>, %arg7: memref<1x1xf32, #tpu.memory_space<vmem>>, %arg8: memref<1x256xf32, #tpu.memory_space<vmem>>) attributes {dimension_semantics = [#tpu.dimension_semantics<parallel>], iteration_bounds = array<i64: 2>, scalar_prefetch = 0 : i64, scratch_operands = 0 : i64, tpu.core_type = #tpu.core_type<tc>, window_params = [{transform_indices = @transform_0, window_bounds = array<i64: 256, 32>}, {pipeline_mode = #tpu.pipeline_mode<synchronous>, transform_indices = @transform_1, window_bounds = array<i64: 32, 128>}, {pipeline_mode = #tpu.pipeline_mode<synchronous>, transform_indices = @transform_2, window_bounds = array<i64: 1, 128>}, {pipeline_mode = #tpu.pipeline_mode<synchronous>, transform_indices = @transform_3, window_bounds = array<i64: 128, 128>}, {pipeline_mode = #tpu.pipeline_mode<synchronous>, transform_indices = @transform_4, window_bounds = array<i64: 1, 128>}, {pipeline_mode = #tpu.pipeline_mode<synchronous>, transform_indices = @transform_5, window_bounds = array<i64: 1, 128>}, {pipeline_mode = #tpu.pipeline_mode<synchronous>, transform_indices = @transform_6, window_bounds = array<i64: 1, 1>}, {transform_indices = @transform_7, window_bounds = array<i64: 1, 256>}]} {
    %c0 = arith.constant 0 : index
    %c0_0 = arith.constant 0 : index
    %0 = vector.load %arg1[%c0, %c0_0] : memref<256x32xbf16, #tpu.memory_space<vmem>>, vector<256x32xbf16>
    %c0_1 = arith.constant 0 : index
    %c0_2 = arith.constant 0 : index
    %1 = vector.load %arg2[%c0_1, %c0_2] : memref<32x128xbf16, #tpu.memory_space<vmem>>, vector<32x128xbf16>
    %cst = arith.constant dense<0.000000e+00> : vector<256x128xf32>
    %2 = tpu.matmul %0, %1, %cst {dimension_numbers = #tpu.dot_dimension_numbers<[1], [0], [0], [1], [0, 0, 1, 1], [], []>} : vector<256x32xbf16>, vector<32x128xbf16>, vector<256x128xf32> -> vector<256x128xf32>
    %c0_3 = arith.constant 0 : index
    %c0_4 = arith.constant 0 : index
    %3 = vector.load %arg3[%c0_3, %c0_4] : memref<1x128xf32, #tpu.memory_space<vmem>>, vector<1x128xf32>
    %4 = vector.broadcast %3 : vector<1x128xf32> to vector<256x128xf32>
    %5 = arith.addf %2, %4 : vector<256x128xf32>
    %cst_5 = arith.constant 0.000000e+00 : f32
    %6 = vector.broadcast %cst_5 : f32 to vector<256x128xf32>
    %7 = arith.maximumf %5, %6 : vector<256x128xf32>
    %8 = arith.truncf %7 : vector<256x128xf32> to vector<256x128xbf16>
    %c0_6 = arith.constant 0 : index
    %c0_7 = arith.constant 0 : index
    %9 = vector.load %arg4[%c0_6, %c0_7] : memref<128x128xbf16, #tpu.memory_space<vmem>>, vector<128x128xbf16>
    %cst_8 = arith.constant dense<0.000000e+00> : vector<256x128xf32>
    %10 = tpu.matmul %8, %9, %cst_8 {dimension_numbers = #tpu.dot_dimension_numbers<[1], [0], [0], [1], [0, 0, 1, 1], [], []>} : vector<256x128xbf16>, vector<128x128xbf16>, vector<256x128xf32> -> vector<256x128xf32>
    %c0_9 = arith.constant 0 : index
    %c0_10 = arith.constant 0 : index
    %11 = vector.load %arg5[%c0_9, %c0_10] : memref<1x128xf32, #tpu.memory_space<vmem>>, vector<1x128xf32>
    %12 = vector.broadcast %11 : vector<1x128xf32> to vector<256x128xf32>
    %13 = arith.addf %10, %12 : vector<256x128xf32>
    %cst_11 = arith.constant 0.000000e+00 : f32
    %14 = vector.broadcast %cst_11 : f32 to vector<256x128xf32>
    %15 = arith.maximumf %13, %14 : vector<256x128xf32>
    %c0_12 = arith.constant 0 : index
    %c0_13 = arith.constant 0 : index
    %16 = vector.load %arg6[%c0_12, %c0_13] : memref<1x128xbf16, #tpu.memory_space<vmem>>, vector<1x128xbf16>
    %17 = arith.truncf %15 : vector<256x128xf32> to vector<256x128xbf16>
    %18 = tpu.transpose %17, [1, 0] : vector<256x128xbf16> -> vector<128x256xbf16>
    %cst_14 = arith.constant dense<0.000000e+00> : vector<1x256xf32>
    %19 = tpu.matmul %16, %18, %cst_14 {dimension_numbers = #tpu.dot_dimension_numbers<[1], [0], [0], [1], [0, 0, 1, 1], [], []>} : vector<1x128xbf16>, vector<128x256xbf16>, vector<1x256xf32> -> vector<1x256xf32>
    %c0_15 = arith.constant 0 : index
    %c0_16 = arith.constant 0 : index
    %20 = vector.load %arg7[%c0_15, %c0_16] : memref<1x1xf32, #tpu.memory_space<vmem>>, vector<1x1xf32>
    %21 = vector.broadcast %20 : vector<1x1xf32> to vector<1x256xf32>
    %22 = arith.addf %19, %21 : vector<1x256xf32>
    %23 = math.erf %22 : vector<1x256xf32>
    %c0_17 = arith.constant 0 : index
    %c0_18 = arith.constant 0 : index
    %24 = vector.load %arg8[%c0_17, %c0_18] : memref<1x256xf32, #tpu.memory_space<vmem>>, vector<1x256xf32>
    tpu.vector_store %arg8[%c0_17, %c0_18], %23 {strides = array<i32>} : memref<1x256xf32, #tpu.memory_space<vmem>>, vector<1x256xf32>,
    return
  }
  func.func @transform_0(%arg0: i32) -> (i32, i32) {
    %c0_i32 = arith.constant 0 : i32
    %c0_i32_0 = arith.constant 0 : i32
    return %arg0, %c0_i32 : i32, i32
  }
  func.func @transform_1(%arg0: i32) -> (i32, i32) {
    %c0_i32 = arith.constant 0 : i32
    %c0_i32_0 = arith.constant 0 : i32
    %c0_i32_1 = arith.constant 0 : i32
    return %c0_i32, %c0_i32_0 : i32, i32
  }
  func.func @transform_2(%arg0: i32) -> (i32, i32) {
    %c0_i32 = arith.constant 0 : i32
    %c0_i32_0 = arith.constant 0 : i32
    %c0_i32_1 = arith.constant 0 : i32
    return %c0_i32, %c0_i32_0 : i32, i32
  }
  func.func @transform_3(%arg0: i32) -> (i32, i32) {
    %c0_i32 = arith.constant 0 : i32
    %c0_i32_0 = arith.constant 0 : i32
    %c0_i32_1 = arith.constant 0 : i32
    return %c0_i32, %c0_i32_0 : i32, i32
  }
  func.func @transform_4(%arg0: i32) -> (i32, i32) {
    %c0_i32 = arith.constant 0 : i32
    %c0_i32_0 = arith.constant 0 : i32
    %c0_i32_1 = arith.constant 0 : i32
    return %c0_i32, %c0_i32_0 : i32, i32
  }
  func.func @transform_5(%arg0: i32) -> (i32, i32) {
    %c0_i32 = arith.constant 0 : i32
    %c0_i32_0 = arith.constant 0 : i32
    %c0_i32_1 = arith.constant 0 : i32
    return %c0_i32, %c0_i32_0 : i32, i32
  }
  func.func @transform_6(%arg0: i32) -> (i32, i32) {
    %c0_i32 = arith.constant 0 : i32
    %c0_i32_0 = arith.constant 0 : i32
    %c0_i32_1 = arith.constant 0 : i32
    return %c0_i32, %c0_i32_0 : i32, i32
  }
  func.func @transform_7(%arg0: i32) -> (i32, i32) {
    %c0_i32 = arith.constant 0 : i32
    %c0_i32_0 = arith.constant 0 : i32
    return %c0_i32, %arg0 : i32, i32
  }
}

</mosaic_0001>

<llo_original>
// kernel: net_8n_forward.1
$region0: #{net_8n_forward.1}
  #allocation0 [shape = 'u32[]', space=smem, size = 0x4, offset = 0x4, fixed_abs, tag = 'smem constant byte address 0x4 - core index']
  #allocation1 [shape = 'u32[72,128]{1,0:T(1,128)}', space=vmem, size = 0x9000, scoped, tag = 'internal scratch']
  #allocation2 [shape = 'f32[1,1]{1,0:T(1,128)S(1)}', space=vmem, size = 0x200, scoped, tag = 'scoped memory for net_8n_forward.1']
  %s0 = inlined_call_operand.vmem [shape: bf16[512,32], index: 0, kind: input, shape index: {}]
  %s1 = inlined_call_operand.vmem [shape: bf16[32,128], index: 1, kind: input, shape index: {}]
  %s2 = inlined_call_operand.vmem [shape: f32[1,128], index: 2, kind: input, shape index: {}]
  %s3 = inlined_call_operand.vmem [shape: bf16[128,128], index: 3, kind: input, shape index: {}]
  %s4 = inlined_call_operand.vmem [shape: f32[1,128], index: 4, kind: input, shape index: {}]
  %s5 = inlined_call_operand.vmem [shape: bf16[1,128], index: 5, kind: input, shape index: {}]
  %s6 = inlined_call_operand.<no memory space> [shape: f32[1,1], index: 6, kind: input, shape index: {}]
  %s7 = inlined_call_operand.hbm [shape: f32[1,512], index: 7, kind: output, shape index: {}]
  %s8 = sld [smem:[#allocation0]]
  $region61: #{net_8n_forward.1} parent=0
    _
  %s10 = ssub.s32 1, %s8
  %s11 = scalar_select 0, %s10, %s8
  %v12 = vstv %s6
  %13 = vst [vmem:[#allocation2] sm:$0x1] %v12
  $region1: #{net_8n_forward.1} parent=0
    #allocation3 [shape = 'u8[2048]{0}', space=vmem, size = 0x800, scoped, tag = 'output window, operand 0']
    #allocation4 [shape = 's32[2]{0}', space=sflag, size = 0x8, scoped, tag = 'scoped memory for net_8n_forward.1']
    %14 = vsyncpa [#allocation4], 0
    %s15 = scalar_lea.sflag [#allocation4], 1
    %16 = vsyncpa %s15, 0
    loop: start=0, step=1, limit=4
    $region2: #{net_8n_forward.1} parent=1 // loop_pre_header
      _
    $region3: #{net_8n_forward.1} parent=1 // loop_header
      %s18 = sphi 0, %s22
      %p19 = scmp.ge.s32.totalorder %s18, 4
      %s28 = sphi 0, %s30
      %s31 = sphi 0, %s28
      %s32 = sphi 0, %s31
      %s48 = sphi 0, %s32
      %s52 = sphi 0, %s52
      %s54 = sphi 0, %s52
      %s55 = sphi 0, %s54
      %s69 = sphi 0, %s55
      %s73 = sphi 0, %s73
      %s75 = sphi 0, %s73
      %s76 = sphi 0, %s75
      %s90 = sphi 0, %s76
      %s94 = sphi 0, %s94
      %s96 = sphi 0, %s94
      %s97 = sphi 0, %s96
      %s111 = sphi 0, %s97
      %s115 = sphi 0, %s115
      %s117 = sphi 0, %s115
      %s118 = sphi 0, %s117
      %s132 = sphi 0, %s118
      %s136 = sphi 0, %s136
      %s138 = sphi 0, %s136
      %s139 = sphi 0, %s138
      %s153 = sphi 0, %s139
      %s157 = sphi 0, %s157
      %s159 = sphi 0, %s157
      %s160 = sphi 0, %s159
      %s174 = sphi 0, %s160
      %s180 = sphi 0, %s182
      %s183 = sphi 0, %s180
      %s184 = sphi 0, %s183
      %s200 = sphi 0, %s184
    $region4: #{net_8n_forward.1} parent=1 // loop_header_branch
      %21 = sbr.rel (%p19) target = $region8
    $region5: #{net_8n_forward.1} parent=1 // loop_body
      %s23 = ssub.s32 %s18, 1
      %s24 = ssub.s32 %s18, 2
      %s25 = sadd.s32 %s18, 1
      %s26 = ssub.s32 %s18, %s25
      %p27 = scmp.eq.s32.totalorder %s26, 0
      %s29 = sadd.s32 %s28, 1
      %s30 = scalar_select %p27, %s28, %s29
      %p33 = pneg %p27
      %p34 = scmp.eq.s32.totalorder %s18, 1
      %p35 = por %p33, %p34
      %p36 = scmp.ne.s32.totalorder %s28, %s31
      %p37 = scmp.eq.s32.totalorder %s18, 0
      %p38 = por %p36, %p37
      %p39 = scmp.ne.s32.totalorder %s28, %s31
      %p40 = scmp.eq.s32.totalorder %s23, 1
      %p41 = por %p39, %p40
      %p42 = scmp.ne.s32.totalorder %s31, %s32
      %p43 = scmp.eq.s32.totalorder %s23, 0
      %p44 = por %p42, %p43
      %p45 = scmp.ne.s32.totalorder %s31, %s32
      %p46 = scmp.eq.s32.totalorder %s24, 1
      %p47 = por %p45, %p46
      %p49 = scmp.ne.s32.totalorder %s32, %s48
      %p50 = scmp.eq.s32.totalorder %s24, 0
      %p51 = por %p49, %p50
      %s53 = sadd.s32 %s52, 1
      %p56 = scmp.eq.s32.totalorder %s18, 1
      %p57 = scmp.ne.s32.totalorder %s52, %s54
      %p58 = scmp.eq.s32.totalorder %s18, 0
      %p59 = por %p57, %p58
      %p60 = scmp.ne.s32.totalorder %s52, %s54
      %p61 = scmp.eq.s32.totalorder %s23, 1
      %p62 = por %p60, %p61
      %p63 = scmp.ne.s32.totalorder %s54, %s55
      %p64 = scmp.eq.s32.totalorder %s23, 0
      %p65 = por %p63, %p64
      %p66 = scmp.ne.s32.totalorder %s54, %s55
      %p67 = scmp.eq.s32.totalorder %s24, 1
      %p68 = por %p66, %p67
      %p70 = scmp.ne.s32.totalorder %s55, %s69
      %p71 = scmp.eq.s32.totalorder %s24, 0
      %p72 = por %p70, %p71
      %s74 = sadd.s32 %s73, 1
      %p77 = scmp.eq.s32.totalorder %s18, 1
      %p78 = scmp.ne.s32.totalorder %s73, %s75
      %p79 = scmp.eq.s32.totalorder %s18, 0
      %p80 = por %p78, %p79
      %p81 = scmp.ne.s32.totalorder %s73, %s75
      %p82 = scmp.eq.s32.totalorder %s23, 1
      %p83 = por %p81, %p82
      %p84 = scmp.ne.s32.totalorder %s75, %s76
      %p85 = scmp.eq.s32.totalorder %s23, 0
      %p86 = por %p84, %p85
      %p87 = scmp.ne.s32.totalorder %s75, %s76
      %p88 = scmp.eq.s32.totalorder %s24, 1
      %p89 = por %p87, %p88
      %p91 = scmp.ne.s32.totalorder %s76, %s90
      %p92 = scmp.eq.s32.totalorder %s24, 0
      %p93 = por %p91, %p92
      %s95 = sadd.s32 %s94, 1
      %p98 = scmp.eq.s32.totalorder %s18, 1
      %p99 = scmp.ne.s32.totalorder %s94, %s96
      %p100 = scmp.eq.s32.totalorder %s18, 0
      %p101 = por %p99, %p100
      %p102 = scmp.ne.s32.totalorder %s94, %s96
      %p103 = scmp.eq.s32.totalorder %s23, 1
      %p104 = por %p102, %p103
      %p105 = scmp.ne.s32.totalorder %s96, %s97
      %p106 = scmp.eq.s32.totalorder %s23, 0
      %p107 = por %p105, %p106
      %p108 = scmp.ne.s32.totalorder %s96, %s97
      %p109 = scmp.eq.s32.totalorder %s24, 1
      %p110 = por %p108, %p109
      %p112 = scmp.ne.s32.totalorder %s97, %s111
      %p113 = scmp.eq.s32.totalorder %s24, 0
      %p114 = por %p112, %p113
      %s116 = sadd.s32 %s115, 1
      %p119 = scmp.eq.s32.totalorder %s18, 1
      %p120 = scmp.ne.s32.totalorder %s115, %s117
      %p121 = scmp.eq.s32.totalorder %s18, 0
      %p122 = por %p120, %p121
      %p123 = scmp.ne.s32.totalorder %s115, %s117
      %p124 = scmp.eq.s32.totalorder %s23, 1
      %p125 = por %p123, %p124
      %p126 = scmp.ne.s32.totalorder %s117, %s118
      %p127 = scmp.eq.s32.totalorder %s23, 0
      %p128 = por %p126, %p127
      %p129 = scmp.ne.s32.totalorder %s117, %s118
      %p130 = scmp.eq.s32.totalorder %s24, 1
      %p131 = por %p129, %p130
      %p133 = scmp.ne.s32.totalorder %s118, %s132
      %p134 = scmp.eq.s32.totalorder %s24, 0
      %p135 = por %p133, %p134
      %s137 = sadd.s32 %s136, 1
      %p140 = scmp.eq.s32.totalorder %s18, 1
      %p141 = scmp.ne.s32.totalorder %s136, %s138
      %p142 = scmp.eq.s32.totalorder %s18, 0
      %p143 = por %p141, %p142
      %p144 = scmp.ne.s32.totalorder %s136, %s138
      %p145 = scmp.eq.s32.totalorder %s23, 1
      %p146 = por %p144, %p145
      %p147 = scmp.ne.s32.totalorder %s138, %s139
      %p148 = scmp.eq.s32.totalorder %s23, 0
      %p149 = por %p147, %p148
      %p150 = scmp.ne.s32.totalorder %s138, %s139
      %p151 = scmp.eq.s32.totalorder %s24, 1
      %p152 = por %p150, %p151
      %p154 = scmp.ne.s32.totalorder %s139, %s153
      %p155 = scmp.eq.s32.totalorder %s24, 0
      %p156 = por %p154, %p155
      %s158 = sadd.s32 %s157, 1
      %p161 = scmp.eq.s32.totalorder %s18, 1
      %p162 = scmp.ne.s32.totalorder %s157, %s159
      %p163 = scmp.eq.s32.totalorder %s18, 0
      %p164 = por %p162, %p163
      %p165 = scmp.ne.s32.totalorder %s157, %s159
      %p166 = scmp.eq.s32.totalorder %s23, 1
      %p167 = por %p165, %p166
      %p168 = scmp.ne.s32.totalorder %s159, %s160
      %p169 = scmp.eq.s32.totalorder %s23, 0
      %p170 = por %p168, %p169
      %p171 = scmp.ne.s32.totalorder %s159, %s160
      %p172 = scmp.eq.s32.totalorder %s24, 1
      %p173 = por %p171, %p172
      %p175 = scmp.ne.s32.totalorder %s160, %s174
      %p176 = scmp.eq.s32.totalorder %s24, 0
      %p177 = por %p175, %p176
      %s178 = ssub.s32 %s18, %s25
      %p179 = scmp.eq.s32.totalorder %s178, 0
      %s181 = sadd.s32 %s180, 1
      %s182 = scalar_select %p179, %s180, %s181
      %p185 = pneg %p179
      %p186 = scmp.eq.s32.totalorder %s18, 1
      %p187 = por %p185, %p186
      %p188 = scmp.ne.s32.totalorder %s180, %s183
      %p189 = scmp.eq.s32.totalorder %s18, 0
      %p190 = por %p188, %p189
      %p191 = scmp.ne.s32.totalorder %s180, %s183
      %p192 = scmp.eq.s32.totalorder %s23, 1
      %p193 = por %p191, %p192
      %p194 = scmp.ne.s32.totalorder %s183, %s184
      %p195 = scmp.eq.s32.totalorder %s23, 0
      %p196 = por %p194, %p195
      %p197 = scmp.ne.s32.totalorder %s183, %s184
      %p198 = scmp.eq.s32.totalorder %s24, 1
      %p199 = por %p197, %p198
      %p201 = scmp.ne.s32.totalorder %s184, %s200
      %p202 = scmp.eq.s32.totalorder %s24, 0
      %p203 = por %p201, %p202
      %p204 = scmp.le.s32.totalorder 1, %s18
      %p205 = scmp.lt.s32.totalorder %s18, 3
      %p206 = pnand %p204, %p205
      %p207 = pneg %p206
      // Predicated region
      $region9: #{net_8n_forward.1} parent=5 // pred_check
        _
      $region10: #{net_8n_forward.1} parent=5 // pred_check_branch
        %209 = sbr.rel (%p206) target = $region12
      $region11: #{net_8n_forward.1} parent=5 // pred_region
        %s210 = ssub.s32 %s18, 1
        // Predicated region
        $region13: #{net_8n_forward.1} parent=11 // pred_check
          %p211 = pneg %p65
        $region14: #{net_8n_forward.1} parent=11 // pred_check_branch
          %213 = sbr.rel (%p211) target = $region16
        $region15: #{net_8n_forward.1} parent=11 // pred_region
          _
        $region16: #{net_8n_forward.1} parent=11 // pred_fallthru
          _
        // Predicated region
        $region17: #{net_8n_forward.1} parent=11 // pred_check
          %p214 = pneg %p86
        $region18: #{net_8n_forward.1} parent=11 // pred_check_branch
          %216 = sbr.rel (%p214) target = $region20
        $region19: #{net_8n_forward.1} parent=11 // pred_region
          _
        $region20: #{net_8n_forward.1} parent=11 // pred_fallthru
          _
        // Predicated region
        $region21: #{net_8n_forward.1} parent=11 // pred_check
          %p217 = pneg %p107
        $region22: #{net_8n_forward.1} parent=11 // pred_check_branch
          %219 = sbr.rel (%p217) target = $region24
        $region23: #{net_8n_forward.1} parent=11 // pred_region
          _
        $region24: #{net_8n_forward.1} parent=11 // pred_fallthru
          _
        // Predicated region
        $region25: #{net_8n_forward.1} parent=11 // pred_check
          %p220 = pneg %p128
        $region26: #{net_8n_forward.1} parent=11 // pred_check_branch
          %222 = sbr.rel (%p220) target = $region28
        $region27: #{net_8n_forward.1} parent=11 // pred_region
          _
        $region28: #{net_8n_forward.1} parent=11 // pred_fallthru
          _
        // Predicated region
        $region29: #{net_8n_forward.1} parent=11 // pred_check
          %p223 = pneg %p149
        $region30: #{net_8n_forward.1} parent=11 // pred_check_branch
          %225 = sbr.rel (%p223) target = $region32
        $region31: #{net_8n_forward.1} parent=11 // pred_region
          _
        $region32: #{net_8n_forward.1} parent=11 // pred_fallthru
          _
        // Predicated region
        $region33: #{net_8n_forward.1} parent=11 // pred_check
          %p226 = pneg %p170
        $region34: #{net_8n_forward.1} parent=11 // pred_check_branch
          %228 = sbr.rel (%p226) target = $region36
        $region35: #{net_8n_forward.1} parent=11 // pred_region
          _
        $region36: #{net_8n_forward.1} parent=11 // pred_fallthru
          _
      $region12: #{net_8n_forward.1} parent=5 // pred_fallthru
        _
      %p229 = scmp.lt.s32.totalorder %s18, 2
      // Predicated region
      $region37: #{net_8n_forward.1} parent=5 // pred_check
        %p230 = pneg %p229
      $region38: #{net_8n_forward.1} parent=5 // pred_check_branch
        %232 = sbr.rel (%p230) target = $region40
      $region39: #{net_8n_forward.1} parent=5 // pred_region
        // Predicated region
        $region41: #{net_8n_forward.1} parent=39 // pred_check
          %p233 = pneg %p38
        $region42: #{net_8n_forward.1} parent=39 // pred_check_branch
          %235 = sbr.rel (%p233) target = $region44
        $region43: #{net_8n_forward.1} parent=39 // pred_region
          %s236 = smul.u32 32, %s18
          %p237 = scmp.lt.s32.totalorder %s236, 63
          %s238 = scalar_select %p237, %s236, 63
          %s239 = smul.addr %s238, 4
          %s240 = scalar_lea.vmem %s0, %s239
          %s241 = smul.u32 32, %s18
        $region44: #{net_8n_forward.1} parent=39 // pred_fallthru
          _
      $region40: #{net_8n_forward.1} parent=5 // pred_fallthru
        _
      %p242 = scmp.le.s32.totalorder 1, %s18
      %p243 = scmp.lt.s32.totalorder %s18, 3
      %p244 = pnand %p242, %p243
      %p245 = pneg %p244
      // Predicated region
      $region45: #{net_8n_forward.1} parent=5 // pred_check
        _
      $region46: #{net_8n_forward.1} parent=5 // pred_check_branch
        %247 = sbr.rel (%p244) target = $region48
      $region47: #{net_8n_forward.1} parent=5 // pred_region
        %s248 = ssub.s32 %s18, 1
        %s249 = smul.u32 32, %s23
        %p250 = scmp.lt.s32.totalorder %s249, 63
        %s251 = scalar_select %p250, %s249, 63
        %s252 = smul.addr %s251, 4
        %s253 = scalar_lea.vmem %s0, %s252
        %p254 = pneg %p44
        %p255 = pneg %p41
        %p256 = pneg %p65
        %p257 = pneg %p62
        %p258 = pneg %p86
        %p259 = pneg %p83
        %p260 = pneg %p107
        %p261 = pneg %p104
        %p262 = pneg %p128
        %p263 = pneg %p125
        %p264 = pneg %p149
        %p265 = pneg %p146
        %p266 = pneg %p170
        %p267 = pneg %p167
        %p268 = pneg %p196
        %p269 = pneg %p193
        %s270 = sand.u32 %s183, 1
        %s271 = scalar_lea.sflag [#allocation4], %s270
        %s272 = sand.u32 %s183, 1
        %s273 = smul.addr %s272, 2
        %s274 = scalar_lea.vmem [#allocation3], %s273
        %s275 = smul.u32 32, %s23
        %p276 = scmp.lt.s32.totalorder %s275, 63
        %s277 = scalar_select %p276, %s275, 63
        %s278 = smul.addr %s277, 4
        %s279 = scalar_lea.vmem %s0, %s278
        %s280 = smul.u32 32, %s23
        %s281 = smul.u32 2, %s23
        %v283 = vld [vmem:[%s279] sm:$0xf]
        %v284 = vld [vmem:[%s279 + $0x4] sm:$0xf]
        %v285 = vld [vmem:[%s279 + $0x8] sm:$0xf]
        %v286 = vld [vmem:[%s279 + $0xc] sm:$0xf]
        %v287 = vld [vmem:[%s279 + $0x10] sm:$0xf]
        %v288 = vld [vmem:[%s279 + $0x14] sm:$0xf]
        %v289 = vld [vmem:[%s279 + $0x18] sm:$0xf]
        %v290 = vld [vmem:[%s279 + $0x1c] sm:$0xf]
        %v291 = vld [vmem:[%s279 + $0x20] sm:$0xf]
        %v292 = vld [vmem:[%s279 + $0x24] sm:$0xf]
        %v293 = vld [vmem:[%s279 + $0x28] sm:$0xf]
        %v294 = vld [vmem:[%s279 + $0x2c] sm:$0xf]
        %v295 = vld [vmem:[%s279 + $0x30] sm:$0xf]
        %v296 = vld [vmem:[%s279 + $0x34] sm:$0xf]
        %v297 = vld [vmem:[%s279 + $0x38] sm:$0xf]
        %v298 = vld [vmem:[%s279 + $0x3c] sm:$0xf]
        %v299 = vld [vmem:[%s279 + $0x40] sm:$0xf]
        %v300 = vld [vmem:[%s279 + $0x44] sm:$0xf]
        %v301 = vld [vmem:[%s279 + $0x48] sm:$0xf]
        %v302 = vld [vmem:[%s279 + $0x4c] sm:$0xf]
        %v303 = vld [vmem:[%s279 + $0x50] sm:$0xf]
        %v304 = vld [vmem:[%s279 + $0x54] sm:$0xf]
        %v305 = vld [vmem:[%s279 + $0x58] sm:$0xf]
        %v306 = vld [vmem:[%s279 + $0x5c] sm:$0xf]
        %v307 = vld [vmem:[%s279 + $0x60] sm:$0xf]
        %v308 = vld [vmem:[%s279 + $0x64] sm:$0xf]
        %v309 = vld [vmem:[%s279 + $0x68] sm:$0xf]
        %v310 = vld [vmem:[%s279 + $0x6c] sm:$0xf]
        %v311 = vld [vmem:[%s279 + $0x70] sm:$0xf]
        %v312 = vld [vmem:[%s279 + $0x74] sm:$0xf]
        %v313 = vld [vmem:[%s279 + $0x78] sm:$0xf]
        %v314 = vld [vmem:[%s279 + $0x7c] sm:$0xf]
        %v315 = vld [vmem:[%s1] sm:$0xf]
        %v316 = vld [vmem:[%s1 + $0x4] sm:$0xf]
        %v317 = vld [vmem:[%s1 + $0x8] sm:$0xf]
        %v318 = vld [vmem:[%s1 + $0xc] sm:$0xf]
        %v319 = vld [vmem:[%s2] sm:$0x1]
        %v321 = vperm.slane %v319, 0
        %v355 = vunpack.c.l.b16 %v283
        %v356 = vunpack.c.l.b16 %v284
        %v357 = vunpack.c.l.b16 %v285
        %v358 = vunpack.c.l.b16 %v286
        %v359 = vunpack.c.l.b16 %v287
        %v360 = vunpack.c.l.b16 %v288
        %v361 = vunpack.c.l.b16 %v289
        %v362 = vunpack.c.l.b16 %v290
        %v363 = vunpack.c.l.b16 %v291
        %v364 = vunpack.c.l.b16 %v292
        %v365 = vunpack.c.l.b16 %v293
        %v366 = vunpack.c.l.b16 %v294
        %v367 = vunpack.c.l.b16 %v295
        %v368 = vunpack.c.l.b16 %v296
        %v369 = vunpack.c.l.b16 %v297
        %v370 = vunpack.c.l.b16 %v298
        %v371 = vunpack.c.l.b16 %v299
        %v372 = vunpack.c.l.b16 %v300
        %v373 = vunpack.c.l.b16 %v301
        %v374 = vunpack.c.l.b16 %v302
        %v375 = vunpack.c.l.b16 %v303
        %v376 = vunpack.c.l.b16 %v304
        %v377 = vunpack.c.l.b16 %v305
        %v378 = vunpack.c.l.b16 %v306
        %v379 = vunpack.c.l.b16 %v307
        %v380 = vunpack.c.l.b16 %v308
        %v381 = vunpack.c.l.b16 %v309
        %v382 = vunpack.c.l.b16 %v310
        %v383 = vunpack.c.l.b16 %v311
        %v384 = vunpack.c.l.b16 %v312
        %v385 = vunpack.c.l.b16 %v313
        %v386 = vunpack.c.l.b16 %v314
        %v387 = vpack.c.b16 %v356, %v355
        %v388 = vpack.c.b16 %v358, %v357
        %v389 = vpack.c.b16 %v360, %v359
        %v390 = vpack.c.b16 %v362, %v361
        %v391 = vpack.c.b16 %v364, %v363
        %v392 = vpack.c.b16 %v366, %v365
        %v393 = vpack.c.b16 %v368, %v367
        %v394 = vpack.c.b16 %v370, %v369
        %v395 = vpack.c.b16 %v372, %v371
        %v396 = vpack.c.b16 %v374, %v373
        %v397 = vpack.c.b16 %v376, %v375
        %v398 = vpack.c.b16 %v378, %v377
        %v399 = vpack.c.b16 %v380, %v379
        %v400 = vpack.c.b16 %v382, %v381
        %v401 = vpack.c.b16 %v384, %v383
        %v402 = vpack.c.b16 %v386, %v385
        %v407 = vunpack.c.l.b16 %v315
        %v408 = vunpack.c.l.b16 %v316
        %v409 = vunpack.c.l.b16 %v317
        %v410 = vunpack.c.l.b16 %v318
        %v411 = vpack.c.b16 %v408, %v407
        %v412 = vpack.c.b16 %v410, %v409
        %vm415 = vcmask 261120
        %v417 = vsel %vm415, %v387, 0
        %v420 = vsel %vm415, %v388, 0
        %v423 = vsel %vm415, %v389, 0
        %v426 = vsel %vm415, %v390, 0
        %v429 = vsel %vm415, %v391, 0
        %v432 = vsel %vm415, %v392, 0
        %v435 = vsel %vm415, %v393, 0
        %v438 = vsel %vm415, %v394, 0
        %v441 = vsel %vm415, %v395, 0
        %v444 = vsel %vm415, %v396, 0
        %v447 = vsel %vm415, %v397, 0
        %v450 = vsel %vm415, %v398, 0
        %v453 = vsel %vm415, %v399, 0
        %v456 = vsel %vm415, %v400, 0
        %v459 = vsel %vm415, %v401, 0
        %v462 = vsel %vm415, %v402, 0
        %464 = vmatpush.bf16.msra.mxu0 0
        %465 = vmatpush.bf16.msra.mxu0 0
        %466 = vmatpush.bf16.msra.mxu0 0
        %467 = vmatpush.bf16.msra.mxu0 0
        %468 = vmatpush.bf16.msra.mxu0 0
        %469 = vmatpush.bf16.msra.mxu0 0
        %470 = vmatpush.bf16.msra.mxu0 %v412
        %471 = vmatpush.bf16.msra.mxu0 %v411
        %472 = vmatmul.bf16.gmra.mxu0 %v417
        %v473 = vpop.f32.mrf.mxu0
        %v474 = vadd.f32 %v321, %v473
        %v475 = vpop.f32.mrf.mxu0
        %v476 = vadd.f32 %v321, %v475
        %477 = vmatmul.bf16.gmra.mxu0 %v420
        %v478 = vpop.f32.mrf.mxu0
        %v479 = vadd.f32 %v321, %v478
        %v480 = vpop.f32.mrf.mxu0
        %v481 = vadd.f32 %v321, %v480
        %482 = vmatmul.bf16.gmra.mxu0 %v423
        %v483 = vpop.f32.mrf.mxu0
        %v484 = vadd.f32 %v321, %v483
        %v485 = vpop.f32.mrf.mxu0
        %v486 = vadd.f32 %v321, %v485
        %487 = vmatmul.bf16.gmra.mxu0 %v426
        %v488 = vpop.f32.mrf.mxu0
        %v489 = vadd.f32 %v321, %v488
        %v490 = vpop.f32.mrf.mxu0
        %v491 = vadd.f32 %v321, %v490
        %492 = vmatmul.bf16.gmra.mxu0 %v429
        %v493 = vpop.f32.mrf.mxu0
        %v494 = vadd.f32 %v321, %v493
        %v495 = vpop.f32.mrf.mxu0
        %v496 = vadd.f32 %v321, %v495
        %497 = vmatmul.bf16.gmra.mxu0 %v432
        %v498 = vpop.f32.mrf.mxu0
        %v499 = vadd.f32 %v321, %v498
        %v500 = vpop.f32.mrf.mxu0
        %v501 = vadd.f32 %v321, %v500
        %502 = vmatmul.bf16.gmra.mxu0 %v435
        %v503 = vpop.f32.mrf.mxu0
        %v504 = vadd.f32 %v321, %v503
        %v505 = vpop.f32.mrf.mxu0
        %v506 = vadd.f32 %v321, %v505
        %507 = vmatmul.bf16.gmra.mxu0 %v438
        %v508 = vpop.f32.mrf.mxu0
        %v509 = vadd.f32 %v321, %v508
        %v510 = vpop.f32.mrf.mxu0
        %v511 = vadd.f32 %v321, %v510
        %512 = vmatmul.bf16.gmra.mxu0 %v441
        %v513 = vpop.f32.mrf.mxu0
        %v514 = vadd.f32 %v321, %v513
        %v515 = vpop.f32.mrf.mxu0
        %v516 = vadd.f32 %v321, %v515
        %517 = vmatmul.bf16.gmra.mxu0 %v444
        %v518 = vpop.f32.mrf.mxu0
        %v519 = vadd.f32 %v321, %v518
        %v520 = vpop.f32.mrf.mxu0
        %v521 = vadd.f32 %v321, %v520
        %522 = vmatmul.bf16.gmra.mxu0 %v447
        %v523 = vpop.f32.mrf.mxu0
        %v524 = vadd.f32 %v321, %v523
        %v525 = vpop.f32.mrf.mxu0
        %v526 = vadd.f32 %v321, %v525
        %527 = vmatmul.bf16.gmra.mxu0 %v450
        %v528 = vpop.f32.mrf.mxu0
        %v529 = vadd.f32 %v321, %v528
        %v530 = vpop.f32.mrf.mxu0
        %v531 = vadd.f32 %v321, %v530
        %532 = vmatmul.bf16.gmra.mxu0 %v453
        %v533 = vpop.f32.mrf.mxu0
        %v534 = vadd.f32 %v321, %v533
        %v535 = vpop.f32.mrf.mxu0
        %v536 = vadd.f32 %v321, %v535
        %537 = vmatmul.bf16.gmra.mxu0 %v456
        %v538 = vpop.f32.mrf.mxu0
        %v539 = vadd.f32 %v321, %v538
        %v540 = vpop.f32.mrf.mxu0
        %v541 = vadd.f32 %v321, %v540
        %542 = vmatmul.bf16.gmra.mxu0 %v459
        %v543 = vpop.f32.mrf.mxu0
        %v544 = vadd.f32 %v321, %v543
        %v545 = vpop.f32.mrf.mxu0
        %v546 = vadd.f32 %v321, %v545
        %547 = vmatmul.bf16.gmra.mxu0 %v462
        %v548 = vpop.f32.mrf.mxu0
        %v549 = vadd.f32 %v321, %v548
        %v550 = vpop.f32.mrf.mxu0
        %v551 = vadd.f32 %v321, %v550
        %552 = vdwg.mxu0
        %v553 = vmax.f32 %v474, 0.0
        %v554 = vmax.f32 %v476, 0.0
        %v555 = vmax.f32 %v479, 0.0
        %v556 = vmax.f32 %v481, 0.0
        %v557 = vmax.f32 %v484, 0.0
        %v558 = vmax.f32 %v486, 0.0
        %v559 = vmax.f32 %v489, 0.0
        %v560 = vmax.f32 %v491, 0.0
        %v561 = vmax.f32 %v494, 0.0
        %v562 = vmax.f32 %v496, 0.0
        %v563 = vmax.f32 %v499, 0.0
        %v564 = vmax.f32 %v501, 0.0
        %v565 = vmax.f32 %v504, 0.0
        %v566 = vmax.f32 %v506, 0.0
        %v567 = vmax.f32 %v509, 0.0
        %v568 = vmax.f32 %v511, 0.0
        %v569 = vmax.f32 %v514, 0.0
        %v570 = vmax.f32 %v516, 0.0
        %v571 = vmax.f32 %v519, 0.0
        %v572 = vmax.f32 %v521, 0.0
        %v573 = vmax.f32 %v524, 0.0
        %v574 = vmax.f32 %v526, 0.0
        %v575 = vmax.f32 %v529, 0.0
        %v576 = vmax.f32 %v531, 0.0
        %v577 = vmax.f32 %v534, 0.0
        %v578 = vmax.f32 %v536, 0.0
        %v579 = vmax.f32 %v539, 0.0
        %v580 = vmax.f32 %v541, 0.0
        %v581 = vmax.f32 %v544, 0.0
        %v582 = vmax.f32 %v546, 0.0
        %v583 = vmax.f32 %v549, 0.0
        %v584 = vmax.f32 %v551, 0.0
        %v585 = vpack.c.bf16 %v554, %v553
        %v586 = vpack.c.bf16 %v556, %v555
        %v587 = vpack.c.bf16 %v558, %v557
        %v588 = vpack.c.bf16 %v560, %v559
        %v589 = vpack.c.bf16 %v562, %v561
        %v590 = vpack.c.bf16 %v564, %v563
        %v591 = vpack.c.bf16 %v566, %v565
        %v592 = vpack.c.bf16 %v568, %v567
        %v593 = vpack.c.bf16 %v570, %v569
        %v594 = vpack.c.bf16 %v572, %v571
        %v595 = vpack.c.bf16 %v574, %v573
        %v596 = vpack.c.bf16 %v576, %v575
        %v597 = vpack.c.bf16 %v578, %v577
        %v598 = vpack.c.bf16 %v580, %v579
        %v599 = vpack.c.bf16 %v582, %v581
        %v600 = vpack.c.bf16 %v584, %v583
        %v601 = vld [vmem:[%s3] sm:$0xf]
        %v602 = vld [vmem:[%s3 + $0x4] sm:$0xf]
        %v603 = vld [vmem:[%s3 + $0x8] sm:$0xf]
        %v604 = vld [vmem:[%s3 + $0xc] sm:$0xf]
        %v605 = vld [vmem:[%s3 + $0x10] sm:$0xf]
        %v606 = vld [vmem:[%s3 + $0x14] sm:$0xf]
        %v607 = vld [vmem:[%s3 + $0x18] sm:$0xf]
        %v608 = vld [vmem:[%s3 + $0x1c] sm:$0xf]
        %v609 = vld [vmem:[%s3 + $0x20] sm:$0xf]
        %v610 = vld [vmem:[%s3 + $0x24] sm:$0xf]
        %v611 = vld [vmem:[%s3 + $0x28] sm:$0xf]
        %v612 = vld [vmem:[%s3 + $0x2c] sm:$0xf]
        %v613 = vld [vmem:[%s3 + $0x30] sm:$0xf]
        %v614 = vld [vmem:[%s3 + $0x34] sm:$0xf]
        %v615 = vld [vmem:[%s3 + $0x38] sm:$0xf]
        %v616 = vld [vmem:[%s3 + $0x3c] sm:$0xf]
        %v617 = vld [vmem:[%s4] sm:$0x1]
        %v619 = vperm.slane %v617, 0
        %v637 = vunpack.c.l.b16 %v601
        %v638 = vunpack.c.l.b16 %v602
        %v639 = vunpack.c.l.b16 %v603
        %v640 = vunpack.c.l.b16 %v604
        %v641 = vunpack.c.l.b16 %v605
        %v642 = vunpack.c.l.b16 %v606
        %v643 = vunpack.c.l.b16 %v607
        %v644 = vunpack.c.l.b16 %v608
        %v645 = vunpack.c.l.b16 %v609
        %v646 = vunpack.c.l.b16 %v610
        %v647 = vunpack.c.l.b16 %v611
        %v648 = vunpack.c.l.b16 %v612
        %v649 = vunpack.c.l.b16 %v613
        %v650 = vunpack.c.l.b16 %v614
        %v651 = vunpack.c.l.b16 %v615
        %v652 = vunpack.c.l.b16 %v616
        %v653 = vpack.c.b16 %v638, %v637
        %v654 = vpack.c.b16 %v640, %v639
        %v655 = vpack.c.b16 %v642, %v641
        %v656 = vpack.c.b16 %v644, %v643
        %v657 = vpack.c.b16 %v646, %v645
        %v658 = vpack.c.b16 %v648, %v647
        %v659 = vpack.c.b16 %v650, %v649
        %v660 = vpack.c.b16 %v652, %v651
        %669 = vmatpush.bf16.msra.mxu0 %v660
        %670 = vmatpush.bf16.msra.mxu0 %v659
        %671 = vmatpush.bf16.msra.mxu0 %v658
        %672 = vmatpush.bf16.msra.mxu0 %v657
        %673 = vmatpush.bf16.msra.mxu0 %v656
        %674 = vmatpush.bf16.msra.mxu0 %v655
        %675 = vmatpush.bf16.msra.mxu0 %v654
        %676 = vmatpush.bf16.msra.mxu0 %v653
        %677 = vmatmul.bf16.gmra.mxu0 %v585
        %v678 = vpop.f32.mrf.mxu0
        %v679 = vadd.f32 %v619, %v678
        %v680 = vpop.f32.mrf.mxu0
        %v681 = vadd.f32 %v619, %v680
        %682 = vmatmul.bf16.gmra.mxu0 %v586
        %v683 = vpop.f32.mrf.mxu0
        %v684 = vadd.f32 %v619, %v683
        %v685 = vpop.f32.mrf.mxu0
        %v686 = vadd.f32 %v619, %v685
        %687 = vmatmul.bf16.gmra.mxu0 %v587
        %v688 = vpop.f32.mrf.mxu0
        %v689 = vadd.f32 %v619, %v688
        %v690 = vpop.f32.mrf.mxu0
        %v691 = vadd.f32 %v619, %v690
        %692 = vmatmul.bf16.gmra.mxu0 %v588
        %v693 = vpop.f32.mrf.mxu0
        %v694 = vadd.f32 %v619, %v693
        %v695 = vpop.f32.mrf.mxu0
        %v696 = vadd.f32 %v619, %v695
        %697 = vmatmul.bf16.gmra.mxu0 %v589
        %v698 = vpop.f32.mrf.mxu0
        %v699 = vadd.f32 %v619, %v698
        %v700 = vpop.f32.mrf.mxu0
        %v701 = vadd.f32 %v619, %v700
        %702 = vmatmul.bf16.gmra.mxu0 %v590
        %v703 = vpop.f32.mrf.mxu0
        %v704 = vadd.f32 %v619, %v703
        %v705 = vpop.f32.mrf.mxu0
        %v706 = vadd.f32 %v619, %v705
        %707 = vmatmul.bf16.gmra.mxu0 %v591
        %v708 = vpop.f32.mrf.mxu0
        %v709 = vadd.f32 %v619, %v708
        %v710 = vpop.f32.mrf.mxu0
        %v711 = vadd.f32 %v619, %v710
        %712 = vmatmul.bf16.gmra.mxu0 %v592
        %v713 = vpop.f32.mrf.mxu0
        %v714 = vadd.f32 %v619, %v713
        %v715 = vpop.f32.mrf.mxu0
        %v716 = vadd.f32 %v619, %v715
        %717 = vmatmul.bf16.gmra.mxu0 %v593
        %v718 = vpop.f32.mrf.mxu0
        %v719 = vadd.f32 %v619, %v718
        %v720 = vpop.f32.mrf.mxu0
        %v721 = vadd.f32 %v619, %v720
        %722 = vmatmul.bf16.gmra.mxu0 %v594
        %v723 = vpop.f32.mrf.mxu0
        %v724 = vadd.f32 %v619, %v723
        %v725 = vpop.f32.mrf.mxu0
        %v726 = vadd.f32 %v619, %v725
        %727 = vmatmul.bf16.gmra.mxu0 %v595
        %v728 = vpop.f32.mrf.mxu0
        %v729 = vadd.f32 %v619, %v728
        %v730 = vpop.f32.mrf.mxu0
        %v731 = vadd.f32 %v619, %v730
        %732 = vmatmul.bf16.gmra.mxu0 %v596
        %v733 = vpop.f32.mrf.mxu0
        %v734 = vadd.f32 %v619, %v733
        %v735 = vpop.f32.mrf.mxu0
        %v736 = vadd.f32 %v619, %v735
        %737 = vmatmul.bf16.gmra.mxu0 %v597
        %v738 = vpop.f32.mrf.mxu0
        %v739 = vadd.f32 %v619, %v738
        %v740 = vpop.f32.mrf.mxu0
        %v741 = vadd.f32 %v619, %v740
        %742 = vmatmul.bf16.gmra.mxu0 %v598
        %v743 = vpop.f32.mrf.mxu0
        %v744 = vadd.f32 %v619, %v743
        %v745 = vpop.f32.mrf.mxu0
        %v746 = vadd.f32 %v619, %v745
        %747 = vmatmul.bf16.gmra.mxu0 %v599
        %v748 = vpop.f32.mrf.mxu0
        %v749 = vadd.f32 %v619, %v748
        %v750 = vpop.f32.mrf.mxu0
        %v751 = vadd.f32 %v619, %v750
        %752 = vmatmul.bf16.gmra.mxu0 %v600
        %v753 = vpop.f32.mrf.mxu0
        %v754 = vadd.f32 %v619, %v753
        %v755 = vpop.f32.mrf.mxu0
        %v756 = vadd.f32 %v619, %v755
        %757 = vdwg.mxu0
        %v758 = vmax.f32 %v679, 0.0
        %v759 = vmax.f32 %v681, 0.0
        %v760 = vmax.f32 %v684, 0.0
        %v761 = vmax.f32 %v686, 0.0
        %v762 = vmax.f32 %v689, 0.0
        %v763 = vmax.f32 %v691, 0.0
        %v764 = vmax.f32 %v694, 0.0
        %v765 = vmax.f32 %v696, 0.0
        %v766 = vmax.f32 %v699, 0.0
        %v767 = vmax.f32 %v701, 0.0
        %v768 = vmax.f32 %v704, 0.0
        %v769 = vmax.f32 %v706, 0.0
        %v770 = vmax.f32 %v709, 0.0
        %v771 = vmax.f32 %v711, 0.0
        %v772 = vmax.f32 %v714, 0.0
        %v773 = vmax.f32 %v716, 0.0
        %v774 = vmax.f32 %v719, 0.0
        %v775 = vmax.f32 %v721, 0.0
        %v776 = vmax.f32 %v724, 0.0
        %v777 = vmax.f32 %v726, 0.0
        %v778 = vmax.f32 %v729, 0.0
        %v779 = vmax.f32 %v731, 0.0
        %v780 = vmax.f32 %v734, 0.0
        %v781 = vmax.f32 %v736, 0.0
        %v782 = vmax.f32 %v739, 0.0
        %v783 = vmax.f32 %v741, 0.0
        %v784 = vmax.f32 %v744, 0.0
        %v785 = vmax.f32 %v746, 0.0
        %v786 = vmax.f32 %v749, 0.0
        %v787 = vmax.f32 %v751, 0.0
        %v788 = vmax.f32 %v754, 0.0
        %v789 = vmax.f32 %v756, 0.0
        %v790 = vld [vmem:[%s5] sm:$0x1]
        %v791 = vpack.c.bf16 %v759, %v758
        %v792 = vpack.c.bf16 %v761, %v760
        %v793 = vpack.c.bf16 %v763, %v762
        %v794 = vpack.c.bf16 %v765, %v764
        %v795 = vpack.c.bf16 %v767, %v766
        %v796 = vpack.c.bf16 %v769, %v768
        %v797 = vpack.c.bf16 %v771, %v770
        %v798 = vpack.c.bf16 %v773, %v772
        %v799 = vpack.c.bf16 %v775, %v774
        %v800 = vpack.c.bf16 %v777, %v776
        %v801 = vpack.c.bf16 %v779, %v778
        %v802 = vpack.c.bf16 %v781, %v780
        %v803 = vpack.c.bf16 %v783, %v782
        %v804 = vpack.c.bf16 %v785, %v784
        %v805 = vpack.c.bf16 %v787, %v786
        %v806 = vpack.c.bf16 %v789, %v788
        %v807 = vld [vmem:[#allocation2] sm:$0x1]
        %809 = vset.pattern.permute.xlu0 0
        %810 = vperm.xlu0 %809, %v807
        %v811 = vpop.permute.xlu0 %810
        %v813 = vperm.slane %v811, 0
        %814 = vmatpush.bf16.xpose.msra.mxu0 %v798
        %815 = vmatpush.bf16.xpose.msra.mxu0 %v797
        %816 = vmatpush.bf16.xpose.msra.mxu0 %v796
        %817 = vmatpush.bf16.xpose.msra.mxu0 %v795
        %818 = vmatpush.bf16.xpose.msra.mxu0 %v794
        %819 = vmatpush.bf16.xpose.msra.mxu0 %v793
        %820 = vmatpush.bf16.xpose.msra.mxu0 %v792
        %821 = vmatpush.bf16.xpose.msra.mxu0 %v791
        %822 = vmatmul.bf16.gmra.mxu0 %v790
        %v823 = vpop.f32.mrf.mxu0
        %v824 = vadd.f32 %v813, %v823
        %v825 = vpop.f32.mrf.mxu0
        %826 = vdwg.mxu0
        %827 = vmatpush.bf16.xpose.msra.mxu0 %v806
        %828 = vmatpush.bf16.xpose.msra.mxu0 %v805
        %829 = vmatpush.bf16.xpose.msra.mxu0 %v804
        %830 = vmatpush.bf16.xpose.msra.mxu0 %v803
        %831 = vmatpush.bf16.xpose.msra.mxu0 %v802
        %832 = vmatpush.bf16.xpose.msra.mxu0 %v801
        %833 = vmatpush.bf16.xpose.msra.mxu0 %v800
        %834 = vmatpush.bf16.xpose.msra.mxu0 %v799
        %835 = vmatmul.bf16.gmra.mxu0 %v790
        %v836 = vpop.f32.mrf.mxu0
        %v837 = vadd.f32 %v813, %v836
        %v838 = vpop.f32.mrf.mxu0
        %839 = vdwg.mxu0
        %v840 = vmul.f32 %v824, %v824
        %v841 = vmin.f32 16.0, %v840
        %v842 = vmul.f32 %v841, 2.1237322e-06
        %v843 = vadd.f32 %v842, 0.00028619796
        %v844 = vmul.f32 %v841, %v843
        %v845 = vadd.f32 %v844, 0.0036580483
        %v846 = vmul.f32 %v841, %v845
        %v847 = vadd.f32 %v846, 0.05243302
        %v848 = vmul.f32 %v841, %v847
        %v849 = vadd.f32 %v848, 0.18741608
        %v850 = vmul.f32 %v841, %v849
        %v851 = vadd.f32 %v850, 1.1283791
        %v852 = vmul.f32 %v824, %v851
        %v853 = vmul.f32 %v841, 3.8918573e-05
        %v854 = vadd.f32 %v853, 0.001143296
        %v855 = vmul.f32 %v841, %v854
        %v856 = vadd.f32 %v855, 0.014752088
        %v857 = vmul.f32 %v841, %v856
        %v858 = vadd.f32 %v857, 0.112945676
        %v859 = vmul.f32 %v841, %v858
        %v860 = vadd.f32 %v859, 0.4994258
        %v861 = vmul.f32 %v841, %v860
        %v862 = vadd.f32 %v861, 1.0
        %v863 = vrcp.pop %v862
        %v864 = vmul.f32 %v862, %v863
        %v865 = vsub.f32 1.0, %v864
        %v866 = vmul.f32 %v863, %v865
        %v867 = vadd.f32 %v863, %v866
        %vm868 = vweird.f32 %v862
        %vm869 = vweird.f32 %v863
        %vm870 = vmor %vm868, %vm869
        %v871 = vsel %vm870, %v863, %v867
        %v872 = vand.u32 2147483647, %v862
        %vm873 = vcmp.eq.f32.partialorder %v872, 8.507059e+37
        %v874 = vand.u32 %v862, 2147483648
        %v875 = vor.u32 1.1754944e-38, %v874
        %v876 = vsel %vm873, %v875, %v871
        %v877 = vmul.f32 %v852, %v876
        %v878 = vmin.f32 %v877, 1.0
        %v879 = vmax.f32 %v878, -1.0
        %v880 = vmul.f32 %v837, %v837
        %v881 = vmin.f32 16.0, %v880
        %v882 = vmul.f32 %v881, 2.1237322e-06
        %v883 = vadd.f32 %v882, 0.00028619796
        %v884 = vmul.f32 %v881, %v883
        %v885 = vadd.f32 %v884, 0.0036580483
        %v886 = vmul.f32 %v881, %v885
        %v887 = vadd.f32 %v886, 0.05243302
        %v888 = vmul.f32 %v881, %v887
        %v889 = vadd.f32 %v888, 0.18741608
        %v890 = vmul.f32 %v881, %v889
        %v891 = vadd.f32 %v890, 1.1283791
        %v892 = vmul.f32 %v837, %v891
        %v893 = vmul.f32 %v881, 3.8918573e-05
        %v894 = vadd.f32 %v893, 0.001143296
        %v895 = vmul.f32 %v881, %v894
        %v896 = vadd.f32 %v895, 0.014752088
        %v897 = vmul.f32 %v881, %v896
        %v898 = vadd.f32 %v897, 0.112945676
        %v899 = vmul.f32 %v881, %v898
        %v900 = vadd.f32 %v899, 0.4994258
        %v901 = vmul.f32 %v881, %v900
        %v902 = vadd.f32 %v901, 1.0
        %v903 = vrcp.pop %v902
        %v904 = vmul.f32 %v902, %v903
        %v905 = vsub.f32 1.0, %v904
        %v906 = vmul.f32 %v903, %v905
        %v907 = vadd.f32 %v903, %v906
        %vm908 = vweird.f32 %v902
        %vm909 = vweird.f32 %v903
        %vm910 = vmor %vm908, %vm909
        %v911 = vsel %vm910, %v903, %v907
        %v912 = vand.u32 2147483647, %v902
        %vm913 = vcmp.eq.f32.partialorder %v912, 8.507059e+37
        %v914 = vand.u32 %v902, 2147483648
        %v915 = vor.u32 1.1754944e-38, %v914
        %v916 = vsel %vm913, %v915, %v911
        %v917 = vmul.f32 %v892, %v916
        %v918 = vmin.f32 %v917, 1.0
        %v919 = vmax.f32 %v918, -1.0
        %v922 = vrot.slane %v919, 7
        %vm923 = vcmask 1040384
        %v924 = vsel %vm923, %v879, %v922
        %v926 = vlaneseq
        %vm927 = vcmp.ge.s32.totalorder %v926, 0
        %vm928 = vcmp.lt.s32.totalorder %v926, 256
        %vm929 = vmand %vm927, %vm928
        %930 = vst.msk [vmem:[%s274] sm:$0x3] %vm929, %v924
        %s931 = sand.u32 %s183, 1
        %s932 = scalar_lea.sflag [#allocation4], %s931
        %s933 = sand.u32 %s183, 1
        %s934 = smul.addr %s933, 2
        %s935 = scalar_lea.vmem [#allocation3], %s934
        // Predicated region
        $region49: #{net_8n_forward.1} parent=47 // pred_check
          %p936 = pneg %p193
        $region50: #{net_8n_forward.1} parent=47 // pred_check_branch
          %938 = sbr.rel (%p936) target = $region52
        $region51: #{net_8n_forward.1} parent=47 // pred_region
          %s939 = smul.u32 2, %s23
          %941 = vsyncadd %s932, 0
          %s942 = scalar_lea.hbm %s7, %s939
          %s944 = sshll.u32 %s935, 4
          %s945 = int_to_ptr.vmem [resolvable:$true] %s944
          %s946 = sshll.u32 %s942, 4
          %s947 = int_to_ptr.hbm [resolvable:$true] %s946
          %949 = dma.vmem_to_hbm [thread:$0]  %s945, 32, %s947, %s932
        $region52: #{net_8n_forward.1} parent=47 // pred_fallthru
          _
      $region48: #{net_8n_forward.1} parent=5 // pred_fallthru
        _
      %p950 = scmp.le.s32.totalorder 2, %s18
      // Predicated region
      $region53: #{net_8n_forward.1} parent=5 // pred_check
        %p951 = pneg %p950
      $region54: #{net_8n_forward.1} parent=5 // pred_check_branch
        %953 = sbr.rel (%p951) target = $region56
      $region55: #{net_8n_forward.1} parent=5 // pred_region
        %s954 = ssub.s32 %s18, 2
        // Predicated region
        $region57: #{net_8n_forward.1} parent=55 // pred_check
          %p955 = pneg %p199
        $region58: #{net_8n_forward.1} parent=55 // pred_check_branch
          %957 = sbr.rel (%p955) target = $region60
        $region59: #{net_8n_forward.1} parent=55 // pred_region
          %s958 = sand.u32 %s184, 1
          %s959 = scalar_lea.sflag [#allocation4], %s958
          %s960 = sand.u32 %s184, 1
          %s961 = smul.addr %s960, 2
          %s962 = scalar_lea.vmem [#allocation3], %s961
          %964 = dma.done %s959, 32
        $region60: #{net_8n_forward.1} parent=55 // pred_fallthru
          _
      $region56: #{net_8n_forward.1} parent=5 // pred_fallthru
        _
    $region6: #{net_8n_forward.1} parent=1 // loop_footer
      %s22 = sadd.s32 1, %s18
    $region7: #{net_8n_forward.1} parent=1 // loop_footer_branch
      %17 = sbr.rel target = $region3
    $region8: #{net_8n_forward.1} parent=1 // loop_exit
      _
    %965 = vsyncpa [#allocation4], 1
    %s966 = scalar_lea.sflag [#allocation4], 1
    %967 = vsyncpa %s966, 1

</llo_original>
